<compile_context>
chip_gen: v7x
topology: tpu7x:2x2x1
jax: 0.10.0
libtpu: 0.0.40
codegen_flags: <defaults>
</compile_context>

<pallas_src>
import jax
import jax.numpy as jnp
from jax.experimental import pallas as pl
from jax.experimental.pallas import tpu as pltpu

NUM_CLASSES = 50       # par.NUM_CLASSES['esc50']
CLS_PAD = 128          # class dim padded to a full lane width
D_IN = 512
D_H0 = 512
D_H1 = 128

_VMEM_LIMIT_BYTES = 40 * 1024 * 1024   # > v5e 16 MiB default, < v7x 64 MiB physical


def _round_up(x, m):
    return ((x + m - 1) // m) * m


def mlp_logsoftmax_kernel(x_ref, w0_ref, b0_ref, w1_ref, b1_ref,
                          w2_ref, b2_ref, o_ref):
    # One batch tile end-to-end: 3 MXU matmuls (bf16 x bf16 -> f32 accum)
    # followed by an f32 log_softmax epilogue.
    x = x_ref[...].astype(jnp.bfloat16)

    h0 = jnp.dot(x, w0_ref[...], preferred_element_type=jnp.float32) + b0_ref[...]
    h0 = jnp.maximum(h0, 0.0)

    h1 = jnp.dot(h0.astype(jnp.bfloat16), w1_ref[...],
                 preferred_element_type=jnp.float32) + b1_ref[...]
    h1 = jnp.maximum(h1, 0.0)

    logits = jnp.dot(h1.astype(jnp.bfloat16), w2_ref[...],
                     preferred_element_type=jnp.float32) + b2_ref[...]

    # Numerically stable log_softmax over the (padded) class axis.  Padded
    # columns carry a -1e30 bias -> they never win the max and exp()->0, so
    # the real 50 classes are identical to an unpadded log_softmax.
    m = jnp.max(logits, axis=-1, keepdims=True)
    shifted = logits - m
    lse = jnp.log(jnp.sum(jnp.exp(shifted), axis=-1, keepdims=True))
    o_ref[...] = (shifted - lse).astype(o_ref.dtype)


def _choose_tile(B, batch_tile):
    """Returns (tile, is_single_step_small_path)."""
    if B < 512:
        # Single grid step over the whole (sublane-rounded) batch; the <=7-row
        # pad is negligible and keeps the one block exact.
        return max(8, _round_up(B, 8)), True
    # Large batch: biggest tile that (a) stays <= batch_tile (VMEM-safe on all
    # generations) and (b) leaves >= 2 grid steps so v7x's two TensorCores can
    # each take a "parallel" slice of the batch.
    tile = min(batch_tile, max(256, _round_up(pl.cdiv(B, 2), 256)))
    return tile, False


def classification_net_forward(x, params, *, batch_tile=1024, slice_output=True):
    """x: [B, 512] float32; params: prepared (bf16 weights, padded classes).

    Returns log-probabilities [B, NUM_CLASSES] (float32).  With
    slice_output=False, returns the lane-padded [rows>=B, 128] slab instead so
    the consumer can fuse the slice into the loss (saves an HBM round trip)."""
    w0, b0, w1, b1, w2, b2 = params
    B = x.shape[0]

    tile, single_step = _choose_tile(B, batch_tile)
    if single_step and tile != B:
        # Tiny-batch path only: pad at most 7 rows (negligible HBM traffic).
        x = jnp.pad(x, ((0, tile - B), (0, 0)))
    rows = x.shape[0]

    grid_steps = pl.cdiv(rows, tile)     # ragged large batches: partial last
    grid = (grid_steps,)                 # block handled by Pallas, no jnp.pad

    # Weights/biases are grid-invariant -> single-buffer them (no second DMA
    # buffer, guaranteed no re-fetch across steps).
    inv = dict(pipeline_mode=pl.Buffered(1))
    in_specs = [
        pl.BlockSpec((tile, D_IN), lambda i: (i, 0)),               # x tile (f32)
        pl.BlockSpec((D_IN, D_H0), lambda i: (0, 0), **inv),        # w0 (bf16)
        pl.BlockSpec((1, D_H0), lambda i: (0, 0), **inv),           # b0 (f32)
        pl.BlockSpec((D_H0, D_H1), lambda i: (0, 0), **inv),        # w1 (bf16)
        pl.BlockSpec((1, D_H1), lambda i: (0, 0), **inv),           # b1 (f32)
        pl.BlockSpec((D_H1, CLS_PAD), lambda i: (0, 0), **inv),     # w2 (bf16, padded)
        pl.BlockSpec((1, CLS_PAD), lambda i: (0, 0), **inv),        # b2 (f32, -1e30 pad)
    ]
    out_specs = pl.BlockSpec((tile, CLS_PAD), lambda i: (i, 0))

    padded_rows = grid_steps * tile
    flops = 2 * padded_rows * (D_IN * D_H0 + D_H0 * D_H1 + D_H1 * CLS_PAD)
    bytes_accessed = (
        rows * D_IN * 4 + rows * CLS_PAD * 4                       # x in, out
        + (D_IN * D_H0 + D_H0 * D_H1 + D_H1 * CLS_PAD) * 2         # bf16 weights
        + (D_H0 + D_H1 + CLS_PAD) * 4)                             # f32 biases
    cost = pl.CostEstimate(flops=flops,
                           transcendentals=padded_rows * (CLS_PAD + 1),
                           bytes_accessed=bytes_accessed)

    out = pl.pallas_call(
        mlp_logsoftmax_kernel,
        out_shape=jax.ShapeDtypeStruct((rows, CLS_PAD), jnp.float32),
        grid=grid,
        in_specs=in_specs,
        out_specs=out_specs,
        compiler_params=pltpu.CompilerParams(
            dimension_semantics=("parallel",),
            vmem_limit_bytes=_VMEM_LIMIT_BYTES),
        cost_estimate=cost,
    )(x, w0, b0, w1, b1, w2, b2)

    if slice_output:
        return out[:B, :NUM_CLASSES]
    return out   # real log-probs live in [:B, :NUM_CLASSES]; rest is padding


def init_params(key):
    """Deterministic synthetic parameters (PyTorch-like uniform fan-in init).

    Weights are [in_features, out_features] (transposed vs PyTorch), f32,
    with the real (unpadded) 50-class last layer."""
    ks = jax.random.split(key, 6)

    def lin(kw, kb, fan_in, fan_out):
        bound = 1.0 / jnp.sqrt(fan_in)
        w = jax.random.uniform(kw, (fan_in, fan_out), jnp.float32, -bound, bound)
        b = jax.random.uniform(kb, (1, fan_out), jnp.float32, -bound, bound)
        return w, b

    w0, b0 = lin(ks[0], ks[1], D_IN, D_H0)
    w1, b1 = lin(ks[2], ks[3], D_H0, D_H1)
    w2, b2 = lin(ks[4], ks[5], D_H1, NUM_CLASSES)
    return (w0, b0, w1, b1, w2, b2)


def prepare_params(raw_params):
    """Kernel-layout params: bf16 weights, f32 biases, class dim padded to 128
    (zero weight columns, -1e30 bias columns)."""
    w0, b0, w1, b1, w2, b2 = raw_params
    pad = CLS_PAD - NUM_CLASSES
    w2p = jnp.pad(w2, ((0, 0), (0, pad)))
    b2p = jnp.pad(b2, ((0, 0), (0, pad)), constant_values=-1e30)
    return (w0.astype(jnp.bfloat16), b0,
            w1.astype(jnp.bfloat16), b1,
            w2p.astype(jnp.bfloat16), b2p)


def reference_forward(x, raw_params):
    """Pure-JAX reference using the same bf16-weight / f32-accumulate recipe
    as the kernel (unpadded classes)."""
    w0, b0, w1, b1, w2, b2 = raw_params
    h = jnp.dot(x.astype(jnp.bfloat16), w0.astype(jnp.bfloat16),
                preferred_element_type=jnp.float32) + b0
    h = jnp.maximum(h, 0.0)
    h = jnp.dot(h.astype(jnp.bfloat16), w1.astype(jnp.bfloat16),
                preferred_element_type=jnp.float32) + b1
    h = jnp.maximum(h, 0.0)
    logits = jnp.dot(h.astype(jnp.bfloat16), w2.astype(jnp.bfloat16),
                     preferred_element_type=jnp.float32) + b2
    return jax.nn.log_softmax(logits, axis=1)


if __name__ == "__main__":
    key = jax.random.PRNGKey(0)
    k_x, k_p = jax.random.split(key)

    raw_params = init_params(k_p)          # f32, unpadded (PyTorch-equivalent)
    params = prepare_params(raw_params)    # bf16 weights, 128-padded classes

    # Tiny eval batch: single grid step, whole (8-row rounded) batch as one tile.
    B_small = 4
    x_small = jax.random.normal(k_x, (B_small, D_IN), dtype=jnp.float32)
    out_small = jax.block_until_ready(classification_net_forward(x_small, params))
    ref_small = reference_forward(x_small, raw_params)
    assert out_small.shape == (B_small, NUM_CLASSES)
    assert jnp.allclose(out_small, ref_small, atol=2e-2, rtol=2e-2), \
        "mismatch vs JAX reference (small batch)"

    # Ragged larger batch: exercises the >=2-step tiled path with a partial
    # boundary block (no wrapper-side padding of x).
    B_big = 600
    x_big = jax.random.normal(k_x, (B_big, D_IN), dtype=jnp.float32)
    out_big = jax.block_until_ready(classification_net_forward(x_big, params))
    ref_big = reference_forward(x_big, raw_params)
    assert out_big.shape == (B_big, NUM_CLASSES)
    assert jnp.allclose(out_big, ref_big, atol=2e-2, rtol=2e-2), \
        "mismatch vs JAX reference (large ragged batch)"

    print("KERNEL_OK")
</pallas_src>

<mosaic_0001>
module attributes {stable_mosaic.version = 11 : i64} {
  func.func @mlp_logsoftmax_kernel(%arg0: i32, %arg1: memref<8x512xf32, #tpu.memory_space<vmem>>, %arg2: memref<512x512xbf16, #tpu.memory_space<vmem>>, %arg3: memref<1x512xf32, #tpu.memory_space<vmem>>, %arg4: memref<512x128xbf16, #tpu.memory_space<vmem>>, %arg5: memref<1x128xf32, #tpu.memory_space<vmem>>, %arg6: memref<128x128xbf16, #tpu.memory_space<vmem>>, %arg7: memref<1x128xf32, #tpu.memory_space<vmem>>, %arg8: memref<8x128xf32, #tpu.memory_space<vmem>>) attributes {dimension_semantics = [#tpu.dimension_semantics<parallel>], iteration_bounds = array<i64: 1>, scalar_prefetch = 0 : i64, scratch_operands = 0 : i64, tpu.core_type = #tpu.core_type<tc>, window_params = [{transform_indices = @transform_0, window_bounds = array<i64: 8, 512>}, {pipeline_mode = #tpu.pipeline_mode<synchronous>, transform_indices = @transform_1, window_bounds = array<i64: 512, 512>}, {pipeline_mode = #tpu.pipeline_mode<synchronous>, transform_indices = @transform_2, window_bounds = array<i64: 1, 512>}, {pipeline_mode = #tpu.pipeline_mode<synchronous>, transform_indices = @transform_3, window_bounds = array<i64: 512, 128>}, {pipeline_mode = #tpu.pipeline_mode<synchronous>, transform_indices = @transform_4, window_bounds = array<i64: 1, 128>}, {pipeline_mode = #tpu.pipeline_mode<synchronous>, transform_indices = @transform_5, window_bounds = array<i64: 128, 128>}, {pipeline_mode = #tpu.pipeline_mode<synchronous>, transform_indices = @transform_6, window_bounds = array<i64: 1, 128>}, {transform_indices = @transform_7, window_bounds = array<i64: 8, 128>}]} {
    %c0 = arith.constant 0 : index
    %c0_0 = arith.constant 0 : index
    %0 = vector.load %arg1[%c0, %c0_0] : memref<8x512xf32, #tpu.memory_space<vmem>>, vector<8x512xf32>
    %1 = arith.truncf %0 : vector<8x512xf32> to vector<8x512xbf16>
    %c0_1 = arith.constant 0 : index
    %c0_2 = arith.constant 0 : index
    %2 = vector.load %arg2[%c0_1, %c0_2] : memref<512x512xbf16, #tpu.memory_space<vmem>>, vector<512x512xbf16>
    %cst = arith.constant dense<0.000000e+00> : vector<8x512xf32>
    %3 = tpu.matmul %1, %2, %cst {dimension_numbers = #tpu.dot_dimension_numbers<[1], [0], [0], [1], [0, 0, 1, 1], [], []>} : vector<8x512xbf16>, vector<512x512xbf16>, vector<8x512xf32> -> vector<8x512xf32>
    %c0_3 = arith.constant 0 : index
    %c0_4 = arith.constant 0 : index
    %4 = vector.load %arg3[%c0_3, %c0_4] : memref<1x512xf32, #tpu.memory_space<vmem>>, vector<1x512xf32>
    %5 = vector.broadcast %4 : vector<1x512xf32> to vector<8x512xf32>
    %6 = arith.addf %3, %5 : vector<8x512xf32>
    %cst_5 = arith.constant 0.000000e+00 : f32
    %7 = vector.broadcast %cst_5 : f32 to vector<8x512xf32>
    %8 = arith.maximumf %6, %7 : vector<8x512xf32>
    %9 = arith.truncf %8 : vector<8x512xf32> to vector<8x512xbf16>
    %c0_6 = arith.constant 0 : index
    %c0_7 = arith.constant 0 : index
    %10 = vector.load %arg4[%c0_6, %c0_7] : memref<512x128xbf16, #tpu.memory_space<vmem>>, vector<512x128xbf16>
    %cst_8 = arith.constant dense<0.000000e+00> : vector<8x128xf32>
    %11 = tpu.matmul %9, %10, %cst_8 {dimension_numbers = #tpu.dot_dimension_numbers<[1], [0], [0], [1], [0, 0, 1, 1], [], []>} : vector<8x512xbf16>, vector<512x128xbf16>, vector<8x128xf32> -> vector<8x128xf32>
    %c0_9 = arith.constant 0 : index
    %c0_10 = arith.constant 0 : index
    %12 = vector.load %arg5[%c0_9, %c0_10] : memref<1x128xf32, #tpu.memory_space<vmem>>, vector<1x128xf32>
    %13 = vector.broadcast %12 : vector<1x128xf32> to vector<8x128xf32>
    %14 = arith.addf %11, %13 : vector<8x128xf32>
    %cst_11 = arith.constant 0.000000e+00 : f32
    %15 = vector.broadcast %cst_11 : f32 to vector<8x128xf32>
    %16 = arith.maximumf %14, %15 : vector<8x128xf32>
    %17 = arith.truncf %16 : vector<8x128xf32> to vector<8x128xbf16>
    %c0_12 = arith.constant 0 : index
    %c0_13 = arith.constant 0 : index
    %18 = vector.load %arg6[%c0_12, %c0_13] : memref<128x128xbf16, #tpu.memory_space<vmem>>, vector<128x128xbf16>
    %cst_14 = arith.constant dense<0.000000e+00> : vector<8x128xf32>
    %19 = tpu.matmul %17, %18, %cst_14 {dimension_numbers = #tpu.dot_dimension_numbers<[1], [0], [0], [1], [0, 0, 1, 1], [], []>} : vector<8x128xbf16>, vector<128x128xbf16>, vector<8x128xf32> -> vector<8x128xf32>
    %c0_15 = arith.constant 0 : index
    %c0_16 = arith.constant 0 : index
    %20 = vector.load %arg7[%c0_15, %c0_16] : memref<1x128xf32, #tpu.memory_space<vmem>>, vector<1x128xf32>
    %21 = vector.broadcast %20 : vector<1x128xf32> to vector<8x128xf32>
    %22 = arith.addf %19, %21 : vector<8x128xf32>
    %cst_17 = arith.constant dense<0xFF800000> : vector<8xf32>
    %23 = vector.multi_reduction <maximumf>, %22, %cst_17 [1] : vector<8x128xf32> to vector<8xf32>
    %24 = vector.shape_cast %23 : vector<8xf32> to vector<8x1xf32>
    %25 = vector.broadcast %24 : vector<8x1xf32> to vector<8x128xf32>
    %26 = arith.subf %22, %25 : vector<8x128xf32>
    %27 = math.exp %26 : vector<8x128xf32>
    %cst_18 = arith.constant dense<0.000000e+00> : vector<8xf32>
    %28 = vector.multi_reduction <add>, %27, %cst_18 [1] : vector<8x128xf32> to vector<8xf32>
    %29 = vector.shape_cast %28 : vector<8xf32> to vector<8x1xf32>
    %30 = math.log %29 : vector<8x1xf32>
    %31 = vector.broadcast %30 : vector<8x1xf32> to vector<8x128xf32>
    %32 = arith.subf %26, %31 : vector<8x128xf32>
    %c0_19 = arith.constant 0 : index
    %c0_20 = arith.constant 0 : index
    %33 = vector.load %arg8[%c0_19, %c0_20] : memref<8x128xf32, #tpu.memory_space<vmem>>, vector<8x128xf32>
    tpu.vector_store %arg8[%c0_19, %c0_20], %32 {strides = array<i32>} : memref<8x128xf32, #tpu.memory_space<vmem>>, vector<8x128xf32>,
    return
  }
  func.func @transform_0(%arg0: i32) -> (i32, i32) {
    %c0_i32 = arith.constant 0 : i32
    %c0_i32_0 = arith.constant 0 : i32
    return %arg0, %c0_i32 : i32, i32
  }
  func.func @transform_1(%arg0: i32) -> (i32, i32) {
    %c0_i32 = arith.constant 0 : i32
    %c0_i32_0 = arith.constant 0 : i32
    %c0_i32_1 = arith.constant 0 : i32
    return %c0_i32, %c0_i32_0 : i32, i32
  }
  func.func @transform_2(%arg0: i32) -> (i32, i32) {
    %c0_i32 = arith.constant 0 : i32
    %c0_i32_0 = arith.constant 0 : i32
    %c0_i32_1 = arith.constant 0 : i32
    return %c0_i32, %c0_i32_0 : i32, i32
  }
  func.func @transform_3(%arg0: i32) -> (i32, i32) {
    %c0_i32 = arith.constant 0 : i32
    %c0_i32_0 = arith.constant 0 : i32
    %c0_i32_1 = arith.constant 0 : i32
    return %c0_i32, %c0_i32_0 : i32, i32
  }
  func.func @transform_4(%arg0: i32) -> (i32, i32) {
    %c0_i32 = arith.constant 0 : i32
    %c0_i32_0 = arith.constant 0 : i32
    %c0_i32_1 = arith.constant 0 : i32
    return %c0_i32, %c0_i32_0 : i32, i32
  }
  func.func @transform_5(%arg0: i32) -> (i32, i32) {
    %c0_i32 = arith.constant 0 : i32
    %c0_i32_0 = arith.constant 0 : i32
    %c0_i32_1 = arith.constant 0 : i32
    return %c0_i32, %c0_i32_0 : i32, i32
  }
  func.func @transform_6(%arg0: i32) -> (i32, i32) {
    %c0_i32 = arith.constant 0 : i32
    %c0_i32_0 = arith.constant 0 : i32
    %c0_i32_1 = arith.constant 0 : i32
    return %c0_i32, %c0_i32_0 : i32, i32
  }
  func.func @transform_7(%arg0: i32) -> (i32, i32) {
    %c0_i32 = arith.constant 0 : i32
    %c0_i32_0 = arith.constant 0 : i32
    return %arg0, %c0_i32 : i32, i32
  }
}

</mosaic_0001>

<llo_original>
// kernel: tpu_custom_call.1
$region0: #{tpu_custom_call.1}
  #allocation0 [shape = 'u32[]', space=smem, size = 0x4, offset = 0x4, fixed_abs, tag = 'smem constant byte address 0x4 - core index']
  #allocation1 [shape = 'u32[144,128]{1,0:T(1,128)}', space=vmem, size = 0x12000, scoped, tag = 'internal scratch']
  %s0 = inlined_call_operand.hbm [shape: f32[8,512], index: 0, kind: input, shape index: {}]
  %s1 = inlined_call_operand.hbm [shape: bf16[512,512], index: 1, kind: input, shape index: {}]
  %s2 = inlined_call_operand.vmem [shape: f32[1,512], index: 2, kind: input, shape index: {}]
  %s3 = inlined_call_operand.hbm [shape: bf16[512,128], index: 3, kind: input, shape index: {}]
  %s4 = inlined_call_operand.vmem [shape: f32[1,128], index: 4, kind: input, shape index: {}]
  %s5 = inlined_call_operand.hbm [shape: bf16[128,128], index: 5, kind: input, shape index: {}]
  %s6 = inlined_call_operand.vmem [shape: f32[1,128], index: 6, kind: input, shape index: {}]
  %s7 = inlined_call_operand.hbm [shape: f32[8,128], index: 7, kind: output, shape index: {}]
  %s8 = sld [smem:[#allocation0]]
  $region54: #{tpu_custom_call.1} parent=0
    _
  %s10 = ssub.s32 1, %s8
  %s11 = scalar_select 0, %s10, %s8
  $region1: #{tpu_custom_call.1} parent=0
    #allocation2 [shape = 'u8[16384]{0}', space=vmem, size = 0x4000, scoped, tag = 'input window, operand 0, single buffered']
    #allocation3 [shape = 's32[1]{0}', space=sflag, size = 0x4, scoped, tag = 'scoped memory for tpu_custom_call.1']
    #allocation4 [shape = 's32[1]{0}', space=sflag, size = 0x4, scoped, tag = 'scoped memory for tpu_custom_call.1']
    #allocation5 [shape = 'u8[524288]{0}', space=vmem, size = 0x80000, scoped, tag = 'input window, operand 1, single buffered']
    #allocation6 [shape = 's32[1]{0}', space=sflag, size = 0x4, scoped, tag = 'scoped memory for tpu_custom_call.1']
    #allocation7 [shape = 'u8[131072]{0}', space=vmem, size = 0x20000, scoped, tag = 'input window, operand 3, single buffered']
    #allocation8 [shape = 'u8[32768]{0}', space=vmem, size = 0x8000, scoped, tag = 'input window, operand 5, single buffered']
    #allocation9 [shape = 's32[1]{0}', space=sflag, size = 0x4, scoped, tag = 'scoped memory for tpu_custom_call.1']
    #allocation10 [shape = 'u8[4096]{0}', space=vmem, size = 0x1000, scoped, tag = 'output window, operand 0, single buffered']
    %12 = vsyncpa [#allocation3], 0
    %13 = vsyncpa [#allocation6], 0
    %14 = vsyncpa [#allocation9], 0
    %15 = vsyncpa [#allocation4], 0
    // Predicated region
    $region2: #{tpu_custom_call.1} parent=1 // pred_check
      _
    $region3: #{tpu_custom_call.1} parent=1 // pred_check_branch
      %17 = sbr.rel (0) target = $region5
    $region4: #{tpu_custom_call.1} parent=1 // pred_region
      %s19 = ssub.s32 512, 512
      %20 = vsyncadd [#allocation3], %s19
      %s22 = sshll.u32 [#allocation2], 4
      %s23 = int_to_ptr.vmem [resolvable:$true] %s22
      %25 = dma.hbm_to_vmem [thread:$0]  %s0, 512, %s23, [#allocation3]
    $region5: #{tpu_custom_call.1} parent=1 // pred_fallthru
      _
    // Predicated region
    $region6: #{tpu_custom_call.1} parent=1 // pred_check
      _
    $region7: #{tpu_custom_call.1} parent=1 // pred_check_branch
      %27 = sbr.rel (0) target = $region9
    $region8: #{tpu_custom_call.1} parent=1 // pred_region
      %s29 = ssub.s32 16384, 16384
      %30 = vsyncadd [#allocation6], %s29
      %s31 = sshll.u32 [#allocation5], 4
      %s32 = int_to_ptr.vmem [resolvable:$true] %s31
      %37 = dma.hbm_to_vmem [thread:$0]  %s1, 16384, %s32, [#allocation6], 256, 256, 16
    $region9: #{tpu_custom_call.1} parent=1 // pred_fallthru
      _
    // Predicated region
    $region10: #{tpu_custom_call.1} parent=1 // pred_check
      _
    $region11: #{tpu_custom_call.1} parent=1 // pred_check_branch
      %39 = sbr.rel (0) target = $region13
    $region12: #{tpu_custom_call.1} parent=1 // pred_region
      _
    $region13: #{tpu_custom_call.1} parent=1 // pred_fallthru
      _
    // Predicated region
    $region14: #{tpu_custom_call.1} parent=1 // pred_check
      _
    $region15: #{tpu_custom_call.1} parent=1 // pred_check_branch
      %41 = sbr.rel (0) target = $region17
    $region16: #{tpu_custom_call.1} parent=1 // pred_region
      %s43 = ssub.s32 4096, 4096
      %44 = vsyncadd [#allocation6], %s43
      %s45 = sshll.u32 [#allocation7], 4
      %s46 = int_to_ptr.vmem [resolvable:$true] %s45
      %51 = dma.hbm_to_vmem [thread:$0]  %s3, 4096, %s46, [#allocation6], 64, 64, 4
    $region17: #{tpu_custom_call.1} parent=1 // pred_fallthru
      _
    // Predicated region
    $region18: #{tpu_custom_call.1} parent=1 // pred_check
      _
    $region19: #{tpu_custom_call.1} parent=1 // pred_check_branch
      %53 = sbr.rel (0) target = $region21
    $region20: #{tpu_custom_call.1} parent=1 // pred_region
      _
    $region21: #{tpu_custom_call.1} parent=1 // pred_fallthru
      _
    // Predicated region
    $region22: #{tpu_custom_call.1} parent=1 // pred_check
      _
    $region23: #{tpu_custom_call.1} parent=1 // pred_check_branch
      %55 = sbr.rel (0) target = $region25
    $region24: #{tpu_custom_call.1} parent=1 // pred_region
      %s57 = ssub.s32 1024, 1024
      %58 = vsyncadd [#allocation9], %s57
      %s59 = sshll.u32 [#allocation8], 4
      %s60 = int_to_ptr.vmem [resolvable:$true] %s59
      %65 = dma.hbm_to_vmem [thread:$0]  %s5, 1024, %s60, [#allocation9], 64, 64, 4
    $region25: #{tpu_custom_call.1} parent=1 // pred_fallthru
      _
    // Predicated region
    $region26: #{tpu_custom_call.1} parent=1 // pred_check
      _
    $region27: #{tpu_custom_call.1} parent=1 // pred_check_branch
      %67 = sbr.rel (0) target = $region29
    $region28: #{tpu_custom_call.1} parent=1 // pred_region
      _
    $region29: #{tpu_custom_call.1} parent=1 // pred_fallthru
      _
    // Predicated region
    $region30: #{tpu_custom_call.1} parent=1 // pred_check
      _
    $region31: #{tpu_custom_call.1} parent=1 // pred_check_branch
      %69 = sbr.rel (0) target = $region33
    $region32: #{tpu_custom_call.1} parent=1 // pred_region
      %70 = dma.done [#allocation3], 512
    $region33: #{tpu_custom_call.1} parent=1 // pred_fallthru
      _
    // Predicated region
    $region34: #{tpu_custom_call.1} parent=1 // pred_check
      _
    $region35: #{tpu_custom_call.1} parent=1 // pred_check_branch
      %72 = sbr.rel (0) target = $region37
    $region36: #{tpu_custom_call.1} parent=1 // pred_region
      %73 = dma.done [#allocation6], 16384
    $region37: #{tpu_custom_call.1} parent=1 // pred_fallthru
      _
    // Predicated region
    $region38: #{tpu_custom_call.1} parent=1 // pred_check
      _
    $region39: #{tpu_custom_call.1} parent=1 // pred_check_branch
      %75 = sbr.rel (0) target = $region41
    $region40: #{tpu_custom_call.1} parent=1 // pred_region
      %76 = dma.done [#allocation6], 4096
    $region41: #{tpu_custom_call.1} parent=1 // pred_fallthru
      _
    // Predicated region
    $region42: #{tpu_custom_call.1} parent=1 // pred_check
      _
    $region43: #{tpu_custom_call.1} parent=1 // pred_check_branch
      %78 = sbr.rel (0) target = $region45
    $region44: #{tpu_custom_call.1} parent=1 // pred_region
      %79 = dma.done [#allocation9], 1024
    $region45: #{tpu_custom_call.1} parent=1 // pred_fallthru
      _
    %v81 = vld [vmem:[#allocation2] sm:$0xff]
    %v82 = vld [vmem:[#allocation2 + $0x8] sm:$0xff]
    %v83 = vld [vmem:[#allocation2 + $0x10] sm:$0xff]
    %v84 = vld [vmem:[#allocation2 + $0x18] sm:$0xff]
    %v85 = vpack.c.bf16 %v81, %v81
    %v86 = vpack.c.bf16 %v82, %v82
    %v87 = vpack.c.bf16 %v83, %v83
    %v88 = vpack.c.bf16 %v84, %v84
    %v89 = vld [vmem:[#allocation5] sm:$0xff]
    %v90 = vld [vmem:[#allocation5 + $0x8] sm:$0xff]
    %v91 = vld [vmem:[#allocation5 + $0x10] sm:$0xff]
    %v92 = vld [vmem:[#allocation5 + $0x18] sm:$0xff]
    %v93 = vld [vmem:[#allocation5 + $0x20] sm:$0xff]
    %v94 = vld [vmem:[#allocation5 + $0x28] sm:$0xff]
    %v95 = vld [vmem:[#allocation5 + $0x30] sm:$0xff]
    %v96 = vld [vmem:[#allocation5 + $0x38] sm:$0xff]
    %v97 = vld [vmem:[#allocation5 + $0x40] sm:$0xff]
    %v98 = vld [vmem:[#allocation5 + $0x48] sm:$0xff]
    %v99 = vld [vmem:[#allocation5 + $0x50] sm:$0xff]
    %v100 = vld [vmem:[#allocation5 + $0x58] sm:$0xff]
    %v101 = vld [vmem:[#allocation5 + $0x60] sm:$0xff]
    %v102 = vld [vmem:[#allocation5 + $0x68] sm:$0xff]
    %v103 = vld [vmem:[#allocation5 + $0x70] sm:$0xff]
    %v104 = vld [vmem:[#allocation5 + $0x78] sm:$0xff]
    %v105 = vld [vmem:[#allocation5 + $0x80] sm:$0xff]
    %v106 = vld [vmem:[#allocation5 + $0x88] sm:$0xff]
    %v107 = vld [vmem:[#allocation5 + $0x90] sm:$0xff]
    %v108 = vld [vmem:[#allocation5 + $0x98] sm:$0xff]
    %v109 = vld [vmem:[#allocation5 + $0xa0] sm:$0xff]
    %v110 = vld [vmem:[#allocation5 + $0xa8] sm:$0xff]
    %v111 = vld [vmem:[#allocation5 + $0xb0] sm:$0xff]
    %v112 = vld [vmem:[#allocation5 + $0xb8] sm:$0xff]
    %v113 = vld [vmem:[#allocation5 + $0xc0] sm:$0xff]
    %v114 = vld [vmem:[#allocation5 + $0xc8] sm:$0xff]
    %v115 = vld [vmem:[#allocation5 + $0xd0] sm:$0xff]
    %v116 = vld [vmem:[#allocation5 + $0xd8] sm:$0xff]
    %v117 = vld [vmem:[#allocation5 + $0xe0] sm:$0xff]
    %v118 = vld [vmem:[#allocation5 + $0xe8] sm:$0xff]
    %v119 = vld [vmem:[#allocation5 + $0xf0] sm:$0xff]
    %v120 = vld [vmem:[#allocation5 + $0xf8] sm:$0xff]
    %v121 = vld [vmem:[#allocation5 + $0x100] sm:$0xff]
    %v122 = vld [vmem:[#allocation5 + $0x108] sm:$0xff]
    %v123 = vld [vmem:[#allocation5 + $0x110] sm:$0xff]
    %v124 = vld [vmem:[#allocation5 + $0x118] sm:$0xff]
    %v125 = vld [vmem:[#allocation5 + $0x120] sm:$0xff]
    %v126 = vld [vmem:[#allocation5 + $0x128] sm:$0xff]
    %v127 = vld [vmem:[#allocation5 + $0x130] sm:$0xff]
    %v128 = vld [vmem:[#allocation5 + $0x138] sm:$0xff]
    %v129 = vld [vmem:[#allocation5 + $0x140] sm:$0xff]
    %v130 = vld [vmem:[#allocation5 + $0x148] sm:$0xff]
    %v131 = vld [vmem:[#allocation5 + $0x150] sm:$0xff]
    %v132 = vld [vmem:[#allocation5 + $0x158] sm:$0xff]
    %v133 = vld [vmem:[#allocation5 + $0x160] sm:$0xff]
    %v134 = vld [vmem:[#allocation5 + $0x168] sm:$0xff]
    %v135 = vld [vmem:[#allocation5 + $0x170] sm:$0xff]
    %v136 = vld [vmem:[#allocation5 + $0x178] sm:$0xff]
    %v137 = vld [vmem:[#allocation5 + $0x180] sm:$0xff]
    %v138 = vld [vmem:[#allocation5 + $0x188] sm:$0xff]
    %v139 = vld [vmem:[#allocation5 + $0x190] sm:$0xff]
    %v140 = vld [vmem:[#allocation5 + $0x198] sm:$0xff]
    %v141 = vld [vmem:[#allocation5 + $0x1a0] sm:$0xff]
    %v142 = vld [vmem:[#allocation5 + $0x1a8] sm:$0xff]
    %v143 = vld [vmem:[#allocation5 + $0x1b0] sm:$0xff]
    %v144 = vld [vmem:[#allocation5 + $0x1b8] sm:$0xff]
    %v145 = vld [vmem:[#allocation5 + $0x1c0] sm:$0xff]
    %v146 = vld [vmem:[#allocation5 + $0x1c8] sm:$0xff]
    %v147 = vld [vmem:[#allocation5 + $0x1d0] sm:$0xff]
    %v148 = vld [vmem:[#allocation5 + $0x1d8] sm:$0xff]
    %v149 = vld [vmem:[#allocation5 + $0x1e0] sm:$0xff]
    %v150 = vld [vmem:[#allocation5 + $0x1e8] sm:$0xff]
    %v151 = vld [vmem:[#allocation5 + $0x1f0] sm:$0xff]
    %v152 = vld [vmem:[#allocation5 + $0x1f8] sm:$0xff]
    %v153 = vld [vmem:[#allocation5 + $0x200] sm:$0xff]
    %v154 = vld [vmem:[#allocation5 + $0x208] sm:$0xff]
    %v155 = vld [vmem:[#allocation5 + $0x210] sm:$0xff]
    %v156 = vld [vmem:[#allocation5 + $0x218] sm:$0xff]
    %v157 = vld [vmem:[#allocation5 + $0x220] sm:$0xff]
    %v158 = vld [vmem:[#allocation5 + $0x228] sm:$0xff]
    %v159 = vld [vmem:[#allocation5 + $0x230] sm:$0xff]
    %v160 = vld [vmem:[#allocation5 + $0x238] sm:$0xff]
    %v161 = vld [vmem:[#allocation5 + $0x240] sm:$0xff]
    %v162 = vld [vmem:[#allocation5 + $0x248] sm:$0xff]
    %v163 = vld [vmem:[#allocation5 + $0x250] sm:$0xff]
    %v164 = vld [vmem:[#allocation5 + $0x258] sm:$0xff]
    %v165 = vld [vmem:[#allocation5 + $0x260] sm:$0xff]
    %v166 = vld [vmem:[#allocation5 + $0x268] sm:$0xff]
    %v167 = vld [vmem:[#allocation5 + $0x270] sm:$0xff]
    %v168 = vld [vmem:[#allocation5 + $0x278] sm:$0xff]
    %v169 = vld [vmem:[#allocation5 + $0x280] sm:$0xff]
    %v170 = vld [vmem:[#allocation5 + $0x288] sm:$0xff]
    %v171 = vld [vmem:[#allocation5 + $0x290] sm:$0xff]
    %v172 = vld [vmem:[#allocation5 + $0x298] sm:$0xff]
    %v173 = vld [vmem:[#allocation5 + $0x2a0] sm:$0xff]
    %v174 = vld [vmem:[#allocation5 + $0x2a8] sm:$0xff]
    %v175 = vld [vmem:[#allocation5 + $0x2b0] sm:$0xff]
    %v176 = vld [vmem:[#allocation5 + $0x2b8] sm:$0xff]
    %v177 = vld [vmem:[#allocation5 + $0x2c0] sm:$0xff]
    %v178 = vld [vmem:[#allocation5 + $0x2c8] sm:$0xff]
    %v179 = vld [vmem:[#allocation5 + $0x2d0] sm:$0xff]
    %v180 = vld [vmem:[#allocation5 + $0x2d8] sm:$0xff]
    %v181 = vld [vmem:[#allocation5 + $0x2e0] sm:$0xff]
    %v182 = vld [vmem:[#allocation5 + $0x2e8] sm:$0xff]
    %v183 = vld [vmem:[#allocation5 + $0x2f0] sm:$0xff]
    %v184 = vld [vmem:[#allocation5 + $0x2f8] sm:$0xff]
    %v185 = vld [vmem:[#allocation5 + $0x300] sm:$0xff]
    %v186 = vld [vmem:[#allocation5 + $0x308] sm:$0xff]
    %v187 = vld [vmem:[#allocation5 + $0x310] sm:$0xff]
    %v188 = vld [vmem:[#allocation5 + $0x318] sm:$0xff]
    %v189 = vld [vmem:[#allocation5 + $0x320] sm:$0xff]
    %v190 = vld [vmem:[#allocation5 + $0x328] sm:$0xff]
    %v191 = vld [vmem:[#allocation5 + $0x330] sm:$0xff]
    %v192 = vld [vmem:[#allocation5 + $0x338] sm:$0xff]
    %v193 = vld [vmem:[#allocation5 + $0x340] sm:$0xff]
    %v194 = vld [vmem:[#allocation5 + $0x348] sm:$0xff]
    %v195 = vld [vmem:[#allocation5 + $0x350] sm:$0xff]
    %v196 = vld [vmem:[#allocation5 + $0x358] sm:$0xff]
    %v197 = vld [vmem:[#allocation5 + $0x360] sm:$0xff]
    %v198 = vld [vmem:[#allocation5 + $0x368] sm:$0xff]
    %v199 = vld [vmem:[#allocation5 + $0x370] sm:$0xff]
    %v200 = vld [vmem:[#allocation5 + $0x378] sm:$0xff]
    %v201 = vld [vmem:[#allocation5 + $0x380] sm:$0xff]
    %v202 = vld [vmem:[#allocation5 + $0x388] sm:$0xff]
    %v203 = vld [vmem:[#allocation5 + $0x390] sm:$0xff]
    %v204 = vld [vmem:[#allocation5 + $0x398] sm:$0xff]
    %v205 = vld [vmem:[#allocation5 + $0x3a0] sm:$0xff]
    %v206 = vld [vmem:[#allocation5 + $0x3a8] sm:$0xff]
    %v207 = vld [vmem:[#allocation5 + $0x3b0] sm:$0xff]
    %v208 = vld [vmem:[#allocation5 + $0x3b8] sm:$0xff]
    %v209 = vld [vmem:[#allocation5 + $0x3c0] sm:$0xff]
    %v210 = vld [vmem:[#allocation5 + $0x3c8] sm:$0xff]
    %v211 = vld [vmem:[#allocation5 + $0x3d0] sm:$0xff]
    %v212 = vld [vmem:[#allocation5 + $0x3d8] sm:$0xff]
    %v213 = vld [vmem:[#allocation5 + $0x3e0] sm:$0xff]
    %v214 = vld [vmem:[#allocation5 + $0x3e8] sm:$0xff]
    %v215 = vld [vmem:[#allocation5 + $0x3f0] sm:$0xff]
    %v216 = vld [vmem:[#allocation5 + $0x3f8] sm:$0xff]
    %v217 = vld [vmem:[%s2] sm:$0xf]
    %v219 = vlaneseq
    %v220 = vshrl.u32 %v219, 7
    %v221 = vsub.s32 0, %v220
    %v222 = vrot.slane %v217, %v221
    %v223 = vlaneseq
    %v224 = vshrl.u32 %v223, 7
    %v225 = vsub.s32 1, %v224
    %v226 = vrot.slane %v217, %v225
    %v227 = vlaneseq
    %v228 = vshrl.u32 %v227, 7
    %v229 = vsub.s32 2, %v228
    %v230 = vrot.slane %v217, %v229
    %v231 = vlaneseq
    %v232 = vshrl.u32 %v231, 7
    %v233 = vsub.s32 3, %v232
    %v234 = vrot.slane %v217, %v233
    %v367 = vunpack.c.l.b16 %v89
    %v368 = vunpack.c.h.b16 %v89
    %v369 = vunpack.c.l.b16 %v90
    %v370 = vunpack.c.h.b16 %v90
    %v371 = vunpack.c.l.b16 %v91
    %v372 = vunpack.c.h.b16 %v91
    %v373 = vunpack.c.l.b16 %v92
    %v374 = vunpack.c.h.b16 %v92
    %v375 = vunpack.c.l.b16 %v93
    %v376 = vunpack.c.h.b16 %v93
    %v377 = vunpack.c.l.b16 %v94
    %v378 = vunpack.c.h.b16 %v94
    %v379 = vunpack.c.l.b16 %v95
    %v380 = vunpack.c.h.b16 %v95
    %v381 = vunpack.c.l.b16 %v96
    %v382 = vunpack.c.h.b16 %v96
    %v383 = vunpack.c.l.b16 %v97
    %v384 = vunpack.c.h.b16 %v97
    %v385 = vunpack.c.l.b16 %v98
    %v386 = vunpack.c.h.b16 %v98
    %v387 = vunpack.c.l.b16 %v99
    %v388 = vunpack.c.h.b16 %v99
    %v389 = vunpack.c.l.b16 %v100
    %v390 = vunpack.c.h.b16 %v100
    %v391 = vunpack.c.l.b16 %v101
    %v392 = vunpack.c.h.b16 %v101
    %v393 = vunpack.c.l.b16 %v102
    %v394 = vunpack.c.h.b16 %v102
    %v395 = vunpack.c.l.b16 %v103
    %v396 = vunpack.c.h.b16 %v103
    %v397 = vunpack.c.l.b16 %v104
    %v398 = vunpack.c.h.b16 %v104
    %v399 = vunpack.c.l.b16 %v105
    %v400 = vunpack.c.h.b16 %v105
    %v401 = vunpack.c.l.b16 %v106
    %v402 = vunpack.c.h.b16 %v106
    %v403 = vunpack.c.l.b16 %v107
    %v404 = vunpack.c.h.b16 %v107
    %v405 = vunpack.c.l.b16 %v108
    %v406 = vunpack.c.h.b16 %v108
    %v407 = vunpack.c.l.b16 %v109
    %v408 = vunpack.c.h.b16 %v109
    %v409 = vunpack.c.l.b16 %v110
    %v410 = vunpack.c.h.b16 %v110
    %v411 = vunpack.c.l.b16 %v111
    %v412 = vunpack.c.h.b16 %v111
    %v413 = vunpack.c.l.b16 %v112
    %v414 = vunpack.c.h.b16 %v112
    %v415 = vunpack.c.l.b16 %v113
    %v416 = vunpack.c.h.b16 %v113
    %v417 = vunpack.c.l.b16 %v114
    %v418 = vunpack.c.h.b16 %v114
    %v419 = vunpack.c.l.b16 %v115
    %v420 = vunpack.c.h.b16 %v115
    %v421 = vunpack.c.l.b16 %v116
    %v422 = vunpack.c.h.b16 %v116
    %v423 = vunpack.c.l.b16 %v117
    %v424 = vunpack.c.h.b16 %v117
    %v425 = vunpack.c.l.b16 %v118
    %v426 = vunpack.c.h.b16 %v118
    %v427 = vunpack.c.l.b16 %v119
    %v428 = vunpack.c.h.b16 %v119
    %v429 = vunpack.c.l.b16 %v120
    %v430 = vunpack.c.h.b16 %v120
    %v431 = vunpack.c.l.b16 %v121
    %v432 = vunpack.c.h.b16 %v121
    %v433 = vunpack.c.l.b16 %v122
    %v434 = vunpack.c.h.b16 %v122
    %v435 = vunpack.c.l.b16 %v123
    %v436 = vunpack.c.h.b16 %v123
    %v437 = vunpack.c.l.b16 %v124
    %v438 = vunpack.c.h.b16 %v124
    %v439 = vunpack.c.l.b16 %v125
    %v440 = vunpack.c.h.b16 %v125
    %v441 = vunpack.c.l.b16 %v126
    %v442 = vunpack.c.h.b16 %v126
    %v443 = vunpack.c.l.b16 %v127
    %v444 = vunpack.c.h.b16 %v127
    %v445 = vunpack.c.l.b16 %v128
    %v446 = vunpack.c.h.b16 %v128
    %v447 = vunpack.c.l.b16 %v129
    %v448 = vunpack.c.h.b16 %v129
    %v449 = vunpack.c.l.b16 %v130
    %v450 = vunpack.c.h.b16 %v130
    %v451 = vunpack.c.l.b16 %v131
    %v452 = vunpack.c.h.b16 %v131
    %v453 = vunpack.c.l.b16 %v132
    %v454 = vunpack.c.h.b16 %v132
    %v455 = vunpack.c.l.b16 %v133
    %v456 = vunpack.c.h.b16 %v133
    %v457 = vunpack.c.l.b16 %v134
    %v458 = vunpack.c.h.b16 %v134
    %v459 = vunpack.c.l.b16 %v135
    %v460 = vunpack.c.h.b16 %v135
    %v461 = vunpack.c.l.b16 %v136
    %v462 = vunpack.c.h.b16 %v136
    %v463 = vunpack.c.l.b16 %v137
    %v464 = vunpack.c.h.b16 %v137
    %v465 = vunpack.c.l.b16 %v138
    %v466 = vunpack.c.h.b16 %v138
    %v467 = vunpack.c.l.b16 %v139
    %v468 = vunpack.c.h.b16 %v139
    %v469 = vunpack.c.l.b16 %v140
    %v470 = vunpack.c.h.b16 %v140
    %v471 = vunpack.c.l.b16 %v141
    %v472 = vunpack.c.h.b16 %v141
    %v473 = vunpack.c.l.b16 %v142
    %v474 = vunpack.c.h.b16 %v142
    %v475 = vunpack.c.l.b16 %v143
    %v476 = vunpack.c.h.b16 %v143
    %v477 = vunpack.c.l.b16 %v144
    %v478 = vunpack.c.h.b16 %v144
    %v479 = vunpack.c.l.b16 %v145
    %v480 = vunpack.c.h.b16 %v145
    %v481 = vunpack.c.l.b16 %v146
    %v482 = vunpack.c.h.b16 %v146
    %v483 = vunpack.c.l.b16 %v147
    %v484 = vunpack.c.h.b16 %v147
    %v485 = vunpack.c.l.b16 %v148
    %v486 = vunpack.c.h.b16 %v148
    %v487 = vunpack.c.l.b16 %v149
    %v488 = vunpack.c.h.b16 %v149
    %v489 = vunpack.c.l.b16 %v150
    %v490 = vunpack.c.h.b16 %v150
    %v491 = vunpack.c.l.b16 %v151
    %v492 = vunpack.c.h.b16 %v151
    %v493 = vunpack.c.l.b16 %v152
    %v494 = vunpack.c.h.b16 %v152
    %v495 = vunpack.c.l.b16 %v153
    %v496 = vunpack.c.h.b16 %v153
    %v497 = vunpack.c.l.b16 %v154
    %v498 = vunpack.c.h.b16 %v154
    %v499 = vunpack.c.l.b16 %v155
    %v500 = vunpack.c.h.b16 %v155
    %v501 = vunpack.c.l.b16 %v156
    %v502 = vunpack.c.h.b16 %v156
    %v503 = vunpack.c.l.b16 %v157
    %v504 = vunpack.c.h.b16 %v157
    %v505 = vunpack.c.l.b16 %v158
    %v506 = vunpack.c.h.b16 %v158
    %v507 = vunpack.c.l.b16 %v159
    %v508 = vunpack.c.h.b16 %v159
    %v509 = vunpack.c.l.b16 %v160
    %v510 = vunpack.c.h.b16 %v160
    %v511 = vunpack.c.l.b16 %v161
    %v512 = vunpack.c.h.b16 %v161
    %v513 = vunpack.c.l.b16 %v162
    %v514 = vunpack.c.h.b16 %v162
    %v515 = vunpack.c.l.b16 %v163
    %v516 = vunpack.c.h.b16 %v163
    %v517 = vunpack.c.l.b16 %v164
    %v518 = vunpack.c.h.b16 %v164
    %v519 = vunpack.c.l.b16 %v165
    %v520 = vunpack.c.h.b16 %v165
    %v521 = vunpack.c.l.b16 %v166
    %v522 = vunpack.c.h.b16 %v166
    %v523 = vunpack.c.l.b16 %v167
    %v524 = vunpack.c.h.b16 %v167
    %v525 = vunpack.c.l.b16 %v168
    %v526 = vunpack.c.h.b16 %v168
    %v527 = vunpack.c.l.b16 %v169
    %v528 = vunpack.c.h.b16 %v169
    %v529 = vunpack.c.l.b16 %v170
    %v530 = vunpack.c.h.b16 %v170
    %v531 = vunpack.c.l.b16 %v171
    %v532 = vunpack.c.h.b16 %v171
    %v533 = vunpack.c.l.b16 %v172
    %v534 = vunpack.c.h.b16 %v172
    %v535 = vunpack.c.l.b16 %v173
    %v536 = vunpack.c.h.b16 %v173
    %v537 = vunpack.c.l.b16 %v174
    %v538 = vunpack.c.h.b16 %v174
    %v539 = vunpack.c.l.b16 %v175
    %v540 = vunpack.c.h.b16 %v175
    %v541 = vunpack.c.l.b16 %v176
    %v542 = vunpack.c.h.b16 %v176
    %v543 = vunpack.c.l.b16 %v177
    %v544 = vunpack.c.h.b16 %v177
    %v545 = vunpack.c.l.b16 %v178
    %v546 = vunpack.c.h.b16 %v178
    %v547 = vunpack.c.l.b16 %v179
    %v548 = vunpack.c.h.b16 %v179
    %v549 = vunpack.c.l.b16 %v180
    %v550 = vunpack.c.h.b16 %v180
    %v551 = vunpack.c.l.b16 %v181
    %v552 = vunpack.c.h.b16 %v181
    %v553 = vunpack.c.l.b16 %v182
    %v554 = vunpack.c.h.b16 %v182
    %v555 = vunpack.c.l.b16 %v183
    %v556 = vunpack.c.h.b16 %v183
    %v557 = vunpack.c.l.b16 %v184
    %v558 = vunpack.c.h.b16 %v184
    %v559 = vunpack.c.l.b16 %v185
    %v560 = vunpack.c.h.b16 %v185
    %v561 = vunpack.c.l.b16 %v186
    %v562 = vunpack.c.h.b16 %v186
    %v563 = vunpack.c.l.b16 %v187
    %v564 = vunpack.c.h.b16 %v187
    %v565 = vunpack.c.l.b16 %v188
    %v566 = vunpack.c.h.b16 %v188
    %v567 = vunpack.c.l.b16 %v189
    %v568 = vunpack.c.h.b16 %v189
    %v569 = vunpack.c.l.b16 %v190
    %v570 = vunpack.c.h.b16 %v190
    %v571 = vunpack.c.l.b16 %v191
    %v572 = vunpack.c.h.b16 %v191
    %v573 = vunpack.c.l.b16 %v192
    %v574 = vunpack.c.h.b16 %v192
    %v575 = vunpack.c.l.b16 %v193
    %v576 = vunpack.c.h.b16 %v193
    %v577 = vunpack.c.l.b16 %v194
    %v578 = vunpack.c.h.b16 %v194
    %v579 = vunpack.c.l.b16 %v195
    %v580 = vunpack.c.h.b16 %v195
    %v581 = vunpack.c.l.b16 %v196
    %v582 = vunpack.c.h.b16 %v196
    %v583 = vunpack.c.l.b16 %v197
    %v584 = vunpack.c.h.b16 %v197
    %v585 = vunpack.c.l.b16 %v198
    %v586 = vunpack.c.h.b16 %v198
    %v587 = vunpack.c.l.b16 %v199
    %v588 = vunpack.c.h.b16 %v199
    %v589 = vunpack.c.l.b16 %v200
    %v590 = vunpack.c.h.b16 %v200
    %v591 = vunpack.c.l.b16 %v201
    %v592 = vunpack.c.h.b16 %v201
    %v593 = vunpack.c.l.b16 %v202
    %v594 = vunpack.c.h.b16 %v202
    %v595 = vunpack.c.l.b16 %v203
    %v596 = vunpack.c.h.b16 %v203
    %v597 = vunpack.c.l.b16 %v204
    %v598 = vunpack.c.h.b16 %v204
    %v599 = vunpack.c.l.b16 %v205
    %v600 = vunpack.c.h.b16 %v205
    %v601 = vunpack.c.l.b16 %v206
    %v602 = vunpack.c.h.b16 %v206
    %v603 = vunpack.c.l.b16 %v207
    %v604 = vunpack.c.h.b16 %v207
    %v605 = vunpack.c.l.b16 %v208
    %v606 = vunpack.c.h.b16 %v208
    %v607 = vunpack.c.l.b16 %v209
    %v608 = vunpack.c.h.b16 %v209
    %v609 = vunpack.c.l.b16 %v210
    %v610 = vunpack.c.h.b16 %v210
    %v611 = vunpack.c.l.b16 %v211
    %v612 = vunpack.c.h.b16 %v211
    %v613 = vunpack.c.l.b16 %v212
    %v614 = vunpack.c.h.b16 %v212
    %v615 = vunpack.c.l.b16 %v213
    %v616 = vunpack.c.h.b16 %v213
    %v617 = vunpack.c.l.b16 %v214
    %v618 = vunpack.c.h.b16 %v214
    %v619 = vunpack.c.l.b16 %v215
    %v620 = vunpack.c.h.b16 %v215
    %v621 = vunpack.c.l.b16 %v216
    %v622 = vunpack.c.h.b16 %v216
    %v623 = vpack.c.b16 %v371, %v367
    %v624 = vpack.c.b16 %v372, %v368
    %v625 = vpack.c.b16 %v373, %v369
    %v626 = vpack.c.b16 %v374, %v370
    %v627 = vpack.c.b16 %v379, %v375
    %v628 = vpack.c.b16 %v380, %v376
    %v629 = vpack.c.b16 %v381, %v377
    %v630 = vpack.c.b16 %v382, %v378
    %v631 = vpack.c.b16 %v387, %v383
    %v632 = vpack.c.b16 %v388, %v384
    %v633 = vpack.c.b16 %v389, %v385
    %v634 = vpack.c.b16 %v390, %v386
    %v635 = vpack.c.b16 %v395, %v391
    %v636 = vpack.c.b16 %v396, %v392
    %v637 = vpack.c.b16 %v397, %v393
    %v638 = vpack.c.b16 %v398, %v394
    %v639 = vpack.c.b16 %v403, %v399
    %v640 = vpack.c.b16 %v404, %v400
    %v641 = vpack.c.b16 %v405, %v401
    %v642 = vpack.c.b16 %v406, %v402
    %v643 = vpack.c.b16 %v411, %v407
    %v644 = vpack.c.b16 %v412, %v408
    %v645 = vpack.c.b16 %v413, %v409
    %v646 = vpack.c.b16 %v414, %v410
    %v647 = vpack.c.b16 %v419, %v415
    %v648 = vpack.c.b16 %v420, %v416
    %v649 = vpack.c.b16 %v421, %v417
    %v650 = vpack.c.b16 %v422, %v418
    %v651 = vpack.c.b16 %v427, %v423
    %v652 = vpack.c.b16 %v428, %v424
    %v653 = vpack.c.b16 %v429, %v425
    %v654 = vpack.c.b16 %v430, %v426
    %v655 = vpack.c.b16 %v435, %v431
    %v656 = vpack.c.b16 %v436, %v432
    %v657 = vpack.c.b16 %v437, %v433
    %v658 = vpack.c.b16 %v438, %v434
    %v659 = vpack.c.b16 %v443, %v439
    %v660 = vpack.c.b16 %v444, %v440
    %v661 = vpack.c.b16 %v445, %v441
    %v662 = vpack.c.b16 %v446, %v442
    %v663 = vpack.c.b16 %v451, %v447
    %v664 = vpack.c.b16 %v452, %v448
    %v665 = vpack.c.b16 %v453, %v449
    %v666 = vpack.c.b16 %v454, %v450
    %v667 = vpack.c.b16 %v459, %v455
    %v668 = vpack.c.b16 %v460, %v456
    %v669 = vpack.c.b16 %v461, %v457
    %v670 = vpack.c.b16 %v462, %v458
    %v671 = vpack.c.b16 %v467, %v463
    %v672 = vpack.c.b16 %v468, %v464
    %v673 = vpack.c.b16 %v469, %v465
    %v674 = vpack.c.b16 %v470, %v466
    %v675 = vpack.c.b16 %v475, %v471
    %v676 = vpack.c.b16 %v476, %v472
    %v677 = vpack.c.b16 %v477, %v473
    %v678 = vpack.c.b16 %v478, %v474
    %v679 = vpack.c.b16 %v483, %v479
    %v680 = vpack.c.b16 %v484, %v480
    %v681 = vpack.c.b16 %v485, %v481
    %v682 = vpack.c.b16 %v486, %v482
    %v683 = vpack.c.b16 %v491, %v487
    %v684 = vpack.c.b16 %v492, %v488
    %v685 = vpack.c.b16 %v493, %v489
    %v686 = vpack.c.b16 %v494, %v490
    %v687 = vpack.c.b16 %v499, %v495
    %v688 = vpack.c.b16 %v500, %v496
    %v689 = vpack.c.b16 %v501, %v497
    %v690 = vpack.c.b16 %v502, %v498
    %v691 = vpack.c.b16 %v507, %v503
    %v692 = vpack.c.b16 %v508, %v504
    %v693 = vpack.c.b16 %v509, %v505
    %v694 = vpack.c.b16 %v510, %v506
    %v695 = vpack.c.b16 %v515, %v511
    %v696 = vpack.c.b16 %v516, %v512
    %v697 = vpack.c.b16 %v517, %v513
    %v698 = vpack.c.b16 %v518, %v514
    %v699 = vpack.c.b16 %v523, %v519
    %v700 = vpack.c.b16 %v524, %v520
    %v701 = vpack.c.b16 %v525, %v521
    %v702 = vpack.c.b16 %v526, %v522
    %v703 = vpack.c.b16 %v531, %v527
    %v704 = vpack.c.b16 %v532, %v528
    %v705 = vpack.c.b16 %v533, %v529
    %v706 = vpack.c.b16 %v534, %v530
    %v707 = vpack.c.b16 %v539, %v535
    %v708 = vpack.c.b16 %v540, %v536
    %v709 = vpack.c.b16 %v541, %v537
    %v710 = vpack.c.b16 %v542, %v538
    %v711 = vpack.c.b16 %v547, %v543
    %v712 = vpack.c.b16 %v548, %v544
    %v713 = vpack.c.b16 %v549, %v545
    %v714 = vpack.c.b16 %v550, %v546
    %v715 = vpack.c.b16 %v555, %v551
    %v716 = vpack.c.b16 %v556, %v552
    %v717 = vpack.c.b16 %v557, %v553
    %v718 = vpack.c.b16 %v558, %v554
    %v719 = vpack.c.b16 %v563, %v559
    %v720 = vpack.c.b16 %v564, %v560
    %v721 = vpack.c.b16 %v565, %v561
    %v722 = vpack.c.b16 %v566, %v562
    %v723 = vpack.c.b16 %v571, %v567
    %v724 = vpack.c.b16 %v572, %v568
    %v725 = vpack.c.b16 %v573, %v569
    %v726 = vpack.c.b16 %v574, %v570
    %v727 = vpack.c.b16 %v579, %v575
    %v728 = vpack.c.b16 %v580, %v576
    %v729 = vpack.c.b16 %v581, %v577
    %v730 = vpack.c.b16 %v582, %v578
    %v731 = vpack.c.b16 %v587, %v583
    %v732 = vpack.c.b16 %v588, %v584
    %v733 = vpack.c.b16 %v589, %v585
    %v734 = vpack.c.b16 %v590, %v586
    %v735 = vpack.c.b16 %v595, %v591
    %v736 = vpack.c.b16 %v596, %v592
    %v737 = vpack.c.b16 %v597, %v593
    %v738 = vpack.c.b16 %v598, %v594
    %v739 = vpack.c.b16 %v603, %v599
    %v740 = vpack.c.b16 %v604, %v600
    %v741 = vpack.c.b16 %v605, %v601
    %v742 = vpack.c.b16 %v606, %v602
    %v743 = vpack.c.b16 %v611, %v607
    %v744 = vpack.c.b16 %v612, %v608
    %v745 = vpack.c.b16 %v613, %v609
    %v746 = vpack.c.b16 %v614, %v610
    %v747 = vpack.c.b16 %v619, %v615
    %v748 = vpack.c.b16 %v620, %v616
    %v749 = vpack.c.b16 %v621, %v617
    %v750 = vpack.c.b16 %v622, %v618
    %879 = vmatprep.subr.bf16.mxu0 %v624
    %880 = vmatpush1.bf16.msra.mxu0 %v623
    %881 = vmatprep.subr.bf16.mxu0 %v628
    %882 = vmatpush1.bf16.msra.mxu0 %v627
    %883 = vmatprep.subr.bf16.mxu0 %v632
    %884 = vmatpush1.bf16.msra.mxu0 %v631
    %885 = vmatprep.subr.bf16.mxu0 %v636
    %886 = vmatpush1.bf16.msra.mxu0 %v635
    %887 = vmatprep.subr.bf16.mxu0 %v640
    %888 = vmatpush1.bf16.msra.mxu0 %v639
    %889 = vmatprep.subr.bf16.mxu0 %v644
    %890 = vmatpush1.bf16.msra.mxu0 %v643
    %891 = vmatprep.subr.bf16.mxu0 %v648
    %892 = vmatpush1.bf16.msra.mxu0 %v647
    %893 = vmatprep.subr.bf16.mxu0 %v652
    %894 = vmatpush1.bf16.msra.mxu0 %v651
    %895 = vmatprep.subr.bf16.mxu0 %v656
    %896 = vmatpush1.bf16.msra.mxu0 %v655
    %897 = vmatprep.subr.bf16.mxu0 %v660
    %898 = vmatpush1.bf16.msra.mxu0 %v659
    %899 = vmatprep.subr.bf16.mxu0 %v664
    %900 = vmatpush1.bf16.msra.mxu0 %v663
    %901 = vmatprep.subr.bf16.mxu0 %v668
    %902 = vmatpush1.bf16.msra.mxu0 %v667
    %903 = vmatprep.subr.bf16.mxu0 %v672
    %904 = vmatpush1.bf16.msra.mxu0 %v671
    %905 = vmatprep.subr.bf16.mxu0 %v676
    %906 = vmatpush1.bf16.msra.mxu0 %v675
    %907 = vmatprep.subr.bf16.mxu0 %v680
    %908 = vmatpush1.bf16.msra.mxu0 %v679
    %909 = vmatprep.subr.bf16.mxu0 %v684
    %910 = vmatpush1.bf16.msra.mxu0 %v683
    %911 = vmatprep.mubr.bf16.mxu0 %v86
    %912 = vmatmul.mubr.bf16.gmra.mrb[0].mxu0 %v85
    %v913 = vpop.f32.mrb[0].mxu0
    %v914 = vadd.f32 %v222, %v913
    %v915 = vpop.f32.mrb[0].mxu0
    %v916 = vadd.f32 %v226, %v915
    %v917 = vpop.f32.mrb[0].mxu0
    %v918 = vpop.f32.mrb[0].mxu0
    %919 = vdwg.mxu0
    %920 = vmatprep.subr.bf16.mxu0 %v688
    %921 = vmatpush1.bf16.msra.mxu0 %v687
    %922 = vmatprep.subr.bf16.mxu0 %v692
    %923 = vmatpush1.bf16.msra.mxu0 %v691
    %924 = vmatprep.subr.bf16.mxu0 %v696
    %925 = vmatpush1.bf16.msra.mxu0 %v695
    %926 = vmatprep.subr.bf16.mxu0 %v700
    %927 = vmatpush1.bf16.msra.mxu0 %v699
    %928 = vmatprep.subr.bf16.mxu0 %v704
    %929 = vmatpush1.bf16.msra.mxu0 %v703
    %930 = vmatprep.subr.bf16.mxu0 %v708
    %931 = vmatpush1.bf16.msra.mxu0 %v707
    %932 = vmatprep.subr.bf16.mxu0 %v712
    %933 = vmatpush1.bf16.msra.mxu0 %v711
    %934 = vmatprep.subr.bf16.mxu0 %v716
    %935 = vmatpush1.bf16.msra.mxu0 %v715
    %936 = vmatprep.subr.bf16.mxu0 %v720
    %937 = vmatpush1.bf16.msra.mxu0 %v719
    %938 = vmatprep.subr.bf16.mxu0 %v724
    %939 = vmatpush1.bf16.msra.mxu0 %v723
    %940 = vmatprep.subr.bf16.mxu0 %v728
    %941 = vmatpush1.bf16.msra.mxu0 %v727
    %942 = vmatprep.subr.bf16.mxu0 %v732
    %943 = vmatpush1.bf16.msra.mxu0 %v731
    %944 = vmatprep.subr.bf16.mxu0 %v736
    %945 = vmatpush1.bf16.msra.mxu0 %v735
    %946 = vmatprep.subr.bf16.mxu0 %v740
    %947 = vmatpush1.bf16.msra.mxu0 %v739
    %948 = vmatprep.subr.bf16.mxu0 %v744
    %949 = vmatpush1.bf16.msra.mxu0 %v743
    %950 = vmatprep.subr.bf16.mxu0 %v748
    %951 = vmatpush1.bf16.msra.mxu0 %v747
    %952 = vmatprep.mubr.bf16.mxu0 %v88
    %953 = vmatmul.mubr.bf16.gmra.mrb[0].mxu0 %v87
    %v954 = vpop.f32.mrb[0].mxu0
    %v955 = vadd.f32 %v914, %v954
    %v956 = vpop.f32.mrb[0].mxu0
    %v957 = vadd.f32 %v916, %v956
    %v958 = vpop.f32.mrb[0].mxu0
    %v959 = vpop.f32.mrb[0].mxu0
    %960 = vdwg.mxu0
    %961 = vmatprep.subr.bf16.mxu0 %v626
    %962 = vmatpush1.bf16.msra.mxu0 %v625
    %963 = vmatprep.subr.bf16.mxu0 %v630
    %964 = vmatpush1.bf16.msra.mxu0 %v629
    %965 = vmatprep.subr.bf16.mxu0 %v634
    %966 = vmatpush1.bf16.msra.mxu0 %v633
    %967 = vmatprep.subr.bf16.mxu0 %v638
    %968 = vmatpush1.bf16.msra.mxu0 %v637
    %969 = vmatprep.subr.bf16.mxu0 %v642
    %970 = vmatpush1.bf16.msra.mxu0 %v641
    %971 = vmatprep.subr.bf16.mxu0 %v646
    %972 = vmatpush1.bf16.msra.mxu0 %v645
    %973 = vmatprep.subr.bf16.mxu0 %v650
    %974 = vmatpush1.bf16.msra.mxu0 %v649
    %975 = vmatprep.subr.bf16.mxu0 %v654
    %976 = vmatpush1.bf16.msra.mxu0 %v653
    %977 = vmatprep.subr.bf16.mxu0 %v658
    %978 = vmatpush1.bf16.msra.mxu0 %v657
    %979 = vmatprep.subr.bf16.mxu0 %v662
    %980 = vmatpush1.bf16.msra.mxu0 %v661
    %981 = vmatprep.subr.bf16.mxu0 %v666
    %982 = vmatpush1.bf16.msra.mxu0 %v665
    %983 = vmatprep.subr.bf16.mxu0 %v670
    %984 = vmatpush1.bf16.msra.mxu0 %v669
    %985 = vmatprep.subr.bf16.mxu0 %v674
    %986 = vmatpush1.bf16.msra.mxu0 %v673
    %987 = vmatprep.subr.bf16.mxu0 %v678
    %988 = vmatpush1.bf16.msra.mxu0 %v677
    %989 = vmatprep.subr.bf16.mxu0 %v682
    %990 = vmatpush1.bf16.msra.mxu0 %v681
    %991 = vmatprep.subr.bf16.mxu0 %v686
    %992 = vmatpush1.bf16.msra.mxu0 %v685
    %993 = vmatprep.mubr.bf16.mxu0 %v86
    %994 = vmatmul.mubr.bf16.gmra.mrb[0].mxu0 %v85
    %v995 = vpop.f32.mrb[0].mxu0
    %v996 = vadd.f32 %v230, %v995
    %v997 = vpop.f32.mrb[0].mxu0
    %v998 = vadd.f32 %v234, %v997
    %v999 = vpop.f32.mrb[0].mxu0
    %v1000 = vpop.f32.mrb[0].mxu0
    %1001 = vdwg.mxu0
    %1002 = vmatprep.subr.bf16.mxu0 %v690
    %1003 = vmatpush1.bf16.msra.mxu0 %v689
    %1004 = vmatprep.subr.bf16.mxu0 %v694
    %1005 = vmatpush1.bf16.msra.mxu0 %v693
    %1006 = vmatprep.subr.bf16.mxu0 %v698
    %1007 = vmatpush1.bf16.msra.mxu0 %v697
    %1008 = vmatprep.subr.bf16.mxu0 %v702
    %1009 = vmatpush1.bf16.msra.mxu0 %v701
    %1010 = vmatprep.subr.bf16.mxu0 %v706
    %1011 = vmatpush1.bf16.msra.mxu0 %v705
    %1012 = vmatprep.subr.bf16.mxu0 %v710
    %1013 = vmatpush1.bf16.msra.mxu0 %v709
    %1014 = vmatprep.subr.bf16.mxu0 %v714
    %1015 = vmatpush1.bf16.msra.mxu0 %v713
    %1016 = vmatprep.subr.bf16.mxu0 %v718
    %1017 = vmatpush1.bf16.msra.mxu0 %v717
    %1018 = vmatprep.subr.bf16.mxu0 %v722
    %1019 = vmatpush1.bf16.msra.mxu0 %v721
    %1020 = vmatprep.subr.bf16.mxu0 %v726
    %1021 = vmatpush1.bf16.msra.mxu0 %v725
    %1022 = vmatprep.subr.bf16.mxu0 %v730
    %1023 = vmatpush1.bf16.msra.mxu0 %v729
    %1024 = vmatprep.subr.bf16.mxu0 %v734
    %1025 = vmatpush1.bf16.msra.mxu0 %v733
    %1026 = vmatprep.subr.bf16.mxu0 %v738
    %1027 = vmatpush1.bf16.msra.mxu0 %v737
    %1028 = vmatprep.subr.bf16.mxu0 %v742
    %1029 = vmatpush1.bf16.msra.mxu0 %v741
    %1030 = vmatprep.subr.bf16.mxu0 %v746
    %1031 = vmatpush1.bf16.msra.mxu0 %v745
    %1032 = vmatprep.subr.bf16.mxu0 %v750
    %1033 = vmatpush1.bf16.msra.mxu0 %v749
    %1034 = vmatprep.mubr.bf16.mxu0 %v88
    %1035 = vmatmul.mubr.bf16.gmra.mrb[0].mxu0 %v87
    %v1036 = vpop.f32.mrb[0].mxu0
    %v1037 = vadd.f32 %v996, %v1036
    %v1038 = vpop.f32.mrb[0].mxu0
    %v1039 = vadd.f32 %v998, %v1038
    %v1040 = vpop.f32.mrb[0].mxu0
    %v1041 = vpop.f32.mrb[0].mxu0
    %1042 = vdwg.mxu0
    %v1043 = vmax.f32 %v955, 0.0
    %v1044 = vmax.f32 %v957, 0.0
    %v1045 = vmax.f32 %v1037, 0.0
    %v1046 = vmax.f32 %v1039, 0.0
    %v1047 = vpack.c.bf16 %v1043, %v1043
    %v1048 = vpack.c.bf16 %v1044, %v1044
    %v1049 = vpack.c.bf16 %v1045, %v1045
    %v1050 = vpack.c.bf16 %v1046, %v1046
    %v1051 = vld [vmem:[#allocation7] sm:$0xf]
    %v1052 = vld [vmem:[#allocation7 + $0x4] sm:$0xf]
    %v1053 = vld [vmem:[#allocation7 + $0x8] sm:$0xf]
    %v1054 = vld [vmem:[#allocation7 + $0xc] sm:$0xf]
    %v1055 = vld [vmem:[#allocation7 + $0x10] sm:$0xf]
    %v1056 = vld [vmem:[#allocation7 + $0x14] sm:$0xf]
    %v1057 = vld [vmem:[#allocation7 + $0x18] sm:$0xf]
    %v1058 = vld [vmem:[#allocation7 + $0x1c] sm:$0xf]
    %v1059 = vld [vmem:[#allocation7 + $0x20] sm:$0xf]
    %v1060 = vld [vmem:[#allocation7 + $0x24] sm:$0xf]
    %v1061 = vld [vmem:[#allocation7 + $0x28] sm:$0xf]
    %v1062 = vld [vmem:[#allocation7 + $0x2c] sm:$0xf]
    %v1063 = vld [vmem:[#allocation7 + $0x30] sm:$0xf]
    %v1064 = vld [vmem:[#allocation7 + $0x34] sm:$0xf]
    %v1065 = vld [vmem:[#allocation7 + $0x38] sm:$0xf]
    %v1066 = vld [vmem:[#allocation7 + $0x3c] sm:$0xf]
    %v1067 = vld [vmem:[#allocation7 + $0x40] sm:$0xf]
    %v1068 = vld [vmem:[#allocation7 + $0x44] sm:$0xf]
    %v1069 = vld [vmem:[#allocation7 + $0x48] sm:$0xf]
    %v1070 = vld [vmem:[#allocation7 + $0x4c] sm:$0xf]
    %v1071 = vld [vmem:[#allocation7 + $0x50] sm:$0xf]
    %v1072 = vld [vmem:[#allocation7 + $0x54] sm:$0xf]
    %v1073 = vld [vmem:[#allocation7 + $0x58] sm:$0xf]
    %v1074 = vld [vmem:[#allocation7 + $0x5c] sm:$0xf]
    %v1075 = vld [vmem:[#allocation7 + $0x60] sm:$0xf]
    %v1076 = vld [vmem:[#allocation7 + $0x64] sm:$0xf]
    %v1077 = vld [vmem:[#allocation7 + $0x68] sm:$0xf]
    %v1078 = vld [vmem:[#allocation7 + $0x6c] sm:$0xf]
    %v1079 = vld [vmem:[#allocation7 + $0x70] sm:$0xf]
    %v1080 = vld [vmem:[#allocation7 + $0x74] sm:$0xf]
    %v1081 = vld [vmem:[#allocation7 + $0x78] sm:$0xf]
    %v1082 = vld [vmem:[#allocation7 + $0x7c] sm:$0xf]
    %v1083 = vld [vmem:[#allocation7 + $0x80] sm:$0xf]
    %v1084 = vld [vmem:[#allocation7 + $0x84] sm:$0xf]
    %v1085 = vld [vmem:[#allocation7 + $0x88] sm:$0xf]
    %v1086 = vld [vmem:[#allocation7 + $0x8c] sm:$0xf]
    %v1087 = vld [vmem:[#allocation7 + $0x90] sm:$0xf]
    %v1088 = vld [vmem:[#allocation7 + $0x94] sm:$0xf]
    %v1089 = vld [vmem:[#allocation7 + $0x98] sm:$0xf]
    %v1090 = vld [vmem:[#allocation7 + $0x9c] sm:$0xf]
    %v1091 = vld [vmem:[#allocation7 + $0xa0] sm:$0xf]
    %v1092 = vld [vmem:[#allocation7 + $0xa4] sm:$0xf]
    %v1093 = vld [vmem:[#allocation7 + $0xa8] sm:$0xf]
    %v1094 = vld [vmem:[#allocation7 + $0xac] sm:$0xf]
    %v1095 = vld [vmem:[#allocation7 + $0xb0] sm:$0xf]
    %v1096 = vld [vmem:[#allocation7 + $0xb4] sm:$0xf]
    %v1097 = vld [vmem:[#allocation7 + $0xb8] sm:$0xf]
    %v1098 = vld [vmem:[#allocation7 + $0xbc] sm:$0xf]
    %v1099 = vld [vmem:[#allocation7 + $0xc0] sm:$0xf]
    %v1100 = vld [vmem:[#allocation7 + $0xc4] sm:$0xf]
    %v1101 = vld [vmem:[#allocation7 + $0xc8] sm:$0xf]
    %v1102 = vld [vmem:[#allocation7 + $0xcc] sm:$0xf]
    %v1103 = vld [vmem:[#allocation7 + $0xd0] sm:$0xf]
    %v1104 = vld [vmem:[#allocation7 + $0xd4] sm:$0xf]
    %v1105 = vld [vmem:[#allocation7 + $0xd8] sm:$0xf]
    %v1106 = vld [vmem:[#allocation7 + $0xdc] sm:$0xf]
    %v1107 = vld [vmem:[#allocation7 + $0xe0] sm:$0xf]
    %v1108 = vld [vmem:[#allocation7 + $0xe4] sm:$0xf]
    %v1109 = vld [vmem:[#allocation7 + $0xe8] sm:$0xf]
    %v1110 = vld [vmem:[#allocation7 + $0xec] sm:$0xf]
    %v1111 = vld [vmem:[#allocation7 + $0xf0] sm:$0xf]
    %v1112 = vld [vmem:[#allocation7 + $0xf4] sm:$0xf]
    %v1113 = vld [vmem:[#allocation7 + $0xf8] sm:$0xf]
    %v1114 = vld [vmem:[#allocation7 + $0xfc] sm:$0xf]
    %v1115 = vld [vmem:[%s4] sm:$0x1]
    %v1117 = vlaneseq
    %v1118 = vshrl.u32 %v1117, 7
    %v1119 = vsub.s32 0, %v1118
    %v1120 = vrot.slane %v1115, %v1119
    %v1186 = vunpack.c.l.b16 %v1051
    %v1187 = vunpack.c.l.b16 %v1052
    %v1188 = vunpack.c.l.b16 %v1053
    %v1189 = vunpack.c.l.b16 %v1054
    %v1190 = vunpack.c.l.b16 %v1055
    %v1191 = vunpack.c.l.b16 %v1056
    %v1192 = vunpack.c.l.b16 %v1057
    %v1193 = vunpack.c.l.b16 %v1058
    %v1194 = vunpack.c.l.b16 %v1059
    %v1195 = vunpack.c.l.b16 %v1060
    %v1196 = vunpack.c.l.b16 %v1061
    %v1197 = vunpack.c.l.b16 %v1062
    %v1198 = vunpack.c.l.b16 %v1063
    %v1199 = vunpack.c.l.b16 %v1064
    %v1200 = vunpack.c.l.b16 %v1065
    %v1201 = vunpack.c.l.b16 %v1066
    %v1202 = vunpack.c.l.b16 %v1067
    %v1203 = vunpack.c.l.b16 %v1068
    %v1204 = vunpack.c.l.b16 %v1069
    %v1205 = vunpack.c.l.b16 %v1070
    %v1206 = vunpack.c.l.b16 %v1071
    %v1207 = vunpack.c.l.b16 %v1072
    %v1208 = vunpack.c.l.b16 %v1073
    %v1209 = vunpack.c.l.b16 %v1074
    %v1210 = vunpack.c.l.b16 %v1075
    %v1211 = vunpack.c.l.b16 %v1076
    %v1212 = vunpack.c.l.b16 %v1077
    %v1213 = vunpack.c.l.b16 %v1078
    %v1214 = vunpack.c.l.b16 %v1079
    %v1215 = vunpack.c.l.b16 %v1080
    %v1216 = vunpack.c.l.b16 %v1081
    %v1217 = vunpack.c.l.b16 %v1082
    %v1218 = vunpack.c.l.b16 %v1083
    %v1219 = vunpack.c.l.b16 %v1084
    %v1220 = vunpack.c.l.b16 %v1085
    %v1221 = vunpack.c.l.b16 %v1086
    %v1222 = vunpack.c.l.b16 %v1087
    %v1223 = vunpack.c.l.b16 %v1088
    %v1224 = vunpack.c.l.b16 %v1089
    %v1225 = vunpack.c.l.b16 %v1090
    %v1226 = vunpack.c.l.b16 %v1091
    %v1227 = vunpack.c.l.b16 %v1092
    %v1228 = vunpack.c.l.b16 %v1093
    %v1229 = vunpack.c.l.b16 %v1094
    %v1230 = vunpack.c.l.b16 %v1095
    %v1231 = vunpack.c.l.b16 %v1096
    %v1232 = vunpack.c.l.b16 %v1097
    %v1233 = vunpack.c.l.b16 %v1098
    %v1234 = vunpack.c.l.b16 %v1099
    %v1235 = vunpack.c.l.b16 %v1100
    %v1236 = vunpack.c.l.b16 %v1101
    %v1237 = vunpack.c.l.b16 %v1102
    %v1238 = vunpack.c.l.b16 %v1103
    %v1239 = vunpack.c.l.b16 %v1104
    %v1240 = vunpack.c.l.b16 %v1105
    %v1241 = vunpack.c.l.b16 %v1106
    %v1242 = vunpack.c.l.b16 %v1107
    %v1243 = vunpack.c.l.b16 %v1108
    %v1244 = vunpack.c.l.b16 %v1109
    %v1245 = vunpack.c.l.b16 %v1110
    %v1246 = vunpack.c.l.b16 %v1111
    %v1247 = vunpack.c.l.b16 %v1112
    %v1248 = vunpack.c.l.b16 %v1113
    %v1249 = vunpack.c.l.b16 %v1114
    %v1250 = vpack.c.b16 %v1187, %v1186
    %v1251 = vpack.c.b16 %v1189, %v1188
    %v1252 = vpack.c.b16 %v1191, %v1190
    %v1253 = vpack.c.b16 %v1193, %v1192
    %v1254 = vpack.c.b16 %v1195, %v1194
    %v1255 = vpack.c.b16 %v1197, %v1196
    %v1256 = vpack.c.b16 %v1199, %v1198
    %v1257 = vpack.c.b16 %v1201, %v1200
    %v1258 = vpack.c.b16 %v1203, %v1202
    %v1259 = vpack.c.b16 %v1205, %v1204
    %v1260 = vpack.c.b16 %v1207, %v1206
    %v1261 = vpack.c.b16 %v1209, %v1208
    %v1262 = vpack.c.b16 %v1211, %v1210
    %v1263 = vpack.c.b16 %v1213, %v1212
    %v1264 = vpack.c.b16 %v1215, %v1214
    %v1265 = vpack.c.b16 %v1217, %v1216
    %v1266 = vpack.c.b16 %v1219, %v1218
    %v1267 = vpack.c.b16 %v1221, %v1220
    %v1268 = vpack.c.b16 %v1223, %v1222
    %v1269 = vpack.c.b16 %v1225, %v1224
    %v1270 = vpack.c.b16 %v1227, %v1226
    %v1271 = vpack.c.b16 %v1229, %v1228
    %v1272 = vpack.c.b16 %v1231, %v1230
    %v1273 = vpack.c.b16 %v1233, %v1232
    %v1274 = vpack.c.b16 %v1235, %v1234
    %v1275 = vpack.c.b16 %v1237, %v1236
    %v1276 = vpack.c.b16 %v1239, %v1238
    %v1277 = vpack.c.b16 %v1241, %v1240
    %v1278 = vpack.c.b16 %v1243, %v1242
    %v1279 = vpack.c.b16 %v1245, %v1244
    %v1280 = vpack.c.b16 %v1247, %v1246
    %v1281 = vpack.c.b16 %v1249, %v1248
    %1314 = vmatprep.subr.bf16.mxu0 0
    %1315 = vmatpush1.bf16.msra.mxu0 %v1250
    %1316 = vmatprep.subr.bf16.mxu0 0
    %1317 = vmatpush1.bf16.msra.mxu0 %v1251
    %1318 = vmatprep.subr.bf16.mxu0 0
    %1319 = vmatpush1.bf16.msra.mxu0 %v1252
    %1320 = vmatprep.subr.bf16.mxu0 0
    %1321 = vmatpush1.bf16.msra.mxu0 %v1253
    %1322 = vmatprep.subr.bf16.mxu0 0
    %1323 = vmatpush1.bf16.msra.mxu0 %v1254
    %1324 = vmatprep.subr.bf16.mxu0 0
    %1325 = vmatpush1.bf16.msra.mxu0 %v1255
    %1326 = vmatprep.subr.bf16.mxu0 0
    %1327 = vmatpush1.bf16.msra.mxu0 %v1256
    %1328 = vmatprep.subr.bf16.mxu0 0
    %1329 = vmatpush1.bf16.msra.mxu0 %v1257
    %1330 = vmatprep.subr.bf16.mxu0 0
    %1331 = vmatpush1.bf16.msra.mxu0 %v1258
    %1332 = vmatprep.subr.bf16.mxu0 0
    %1333 = vmatpush1.bf16.msra.mxu0 %v1259
    %1334 = vmatprep.subr.bf16.mxu0 0
    %1335 = vmatpush1.bf16.msra.mxu0 %v1260
    %1336 = vmatprep.subr.bf16.mxu0 0
    %1337 = vmatpush1.bf16.msra.mxu0 %v1261
    %1338 = vmatprep.subr.bf16.mxu0 0
    %1339 = vmatpush1.bf16.msra.mxu0 %v1262
    %1340 = vmatprep.subr.bf16.mxu0 0
    %1341 = vmatpush1.bf16.msra.mxu0 %v1263
    %1342 = vmatprep.subr.bf16.mxu0 0
    %1343 = vmatpush1.bf16.msra.mxu0 %v1264
    %1344 = vmatprep.subr.bf16.mxu0 0
    %1345 = vmatpush1.bf16.msra.mxu0 %v1265
    %1346 = vmatprep.mubr.bf16.mxu0 %v1048
    %1347 = vmatmul.mubr.bf16.gmra.mrb[0].mxu0 %v1047
    %v1348 = vpop.f32.mrb[0].mxu0
    %v1349 = vadd.f32 %v1120, %v1348
    %v1350 = vpop.f32.mrb[0].mxu0
    %v1351 = vpop.f32.mrb[0].mxu0
    %v1352 = vpop.f32.mrb[0].mxu0
    %1353 = vdwg.mxu0
    %1354 = vmatprep.subr.bf16.mxu0 0
    %1355 = vmatpush1.bf16.msra.mxu0 %v1266
    %1356 = vmatprep.subr.bf16.mxu0 0
    %1357 = vmatpush1.bf16.msra.mxu0 %v1267
    %1358 = vmatprep.subr.bf16.mxu0 0
    %1359 = vmatpush1.bf16.msra.mxu0 %v1268
    %1360 = vmatprep.subr.bf16.mxu0 0
    %1361 = vmatpush1.bf16.msra.mxu0 %v1269
    %1362 = vmatprep.subr.bf16.mxu0 0
    %1363 = vmatpush1.bf16.msra.mxu0 %v1270
    %1364 = vmatprep.subr.bf16.mxu0 0
    %1365 = vmatpush1.bf16.msra.mxu0 %v1271
    %1366 = vmatprep.subr.bf16.mxu0 0
    %1367 = vmatpush1.bf16.msra.mxu0 %v1272
    %1368 = vmatprep.subr.bf16.mxu0 0
    %1369 = vmatpush1.bf16.msra.mxu0 %v1273
    %1370 = vmatprep.subr.bf16.mxu0 0
    %1371 = vmatpush1.bf16.msra.mxu0 %v1274
    %1372 = vmatprep.subr.bf16.mxu0 0
    %1373 = vmatpush1.bf16.msra.mxu0 %v1275
    %1374 = vmatprep.subr.bf16.mxu0 0
    %1375 = vmatpush1.bf16.msra.mxu0 %v1276
    %1376 = vmatprep.subr.bf16.mxu0 0
    %1377 = vmatpush1.bf16.msra.mxu0 %v1277
    %1378 = vmatprep.subr.bf16.mxu0 0
    %1379 = vmatpush1.bf16.msra.mxu0 %v1278
    %1380 = vmatprep.subr.bf16.mxu0 0
    %1381 = vmatpush1.bf16.msra.mxu0 %v1279
    %1382 = vmatprep.subr.bf16.mxu0 0
    %1383 = vmatpush1.bf16.msra.mxu0 %v1280
    %1384 = vmatprep.subr.bf16.mxu0 0
    %1385 = vmatpush1.bf16.msra.mxu0 %v1281
    %1386 = vmatprep.mubr.bf16.mxu0 %v1050
    %1387 = vmatmul.mubr.bf16.gmra.mrb[0].mxu0 %v1049
    %v1388 = vpop.f32.mrb[0].mxu0
    %v1389 = vadd.f32 %v1349, %v1388
    %v1390 = vpop.f32.mrb[0].mxu0
    %v1391 = vpop.f32.mrb[0].mxu0
    %v1392 = vpop.f32.mrb[0].mxu0
    %1393 = vdwg.mxu0
    %v1394 = vmax.f32 %v1389, 0.0
    %v1395 = vpack.c.bf16 %v1394, %v1394
    %v1396 = vld [vmem:[#allocation8] sm:$0xf]
    %v1397 = vld [vmem:[#allocation8 + $0x4] sm:$0xf]
    %v1398 = vld [vmem:[#allocation8 + $0x8] sm:$0xf]
    %v1399 = vld [vmem:[#allocation8 + $0xc] sm:$0xf]
    %v1400 = vld [vmem:[#allocation8 + $0x10] sm:$0xf]
    %v1401 = vld [vmem:[#allocation8 + $0x14] sm:$0xf]
    %v1402 = vld [vmem:[#allocation8 + $0x18] sm:$0xf]
    %v1403 = vld [vmem:[#allocation8 + $0x1c] sm:$0xf]
    %v1404 = vld [vmem:[#allocation8 + $0x20] sm:$0xf]
    %v1405 = vld [vmem:[#allocation8 + $0x24] sm:$0xf]
    %v1406 = vld [vmem:[#allocation8 + $0x28] sm:$0xf]
    %v1407 = vld [vmem:[#allocation8 + $0x2c] sm:$0xf]
    %v1408 = vld [vmem:[#allocation8 + $0x30] sm:$0xf]
    %v1409 = vld [vmem:[#allocation8 + $0x34] sm:$0xf]
    %v1410 = vld [vmem:[#allocation8 + $0x38] sm:$0xf]
    %v1411 = vld [vmem:[#allocation8 + $0x3c] sm:$0xf]
    %v1412 = vld [vmem:[%s6] sm:$0x1]
    %v1414 = vlaneseq
    %v1415 = vshrl.u32 %v1414, 7
    %v1416 = vsub.s32 0, %v1415
    %v1417 = vrot.slane %v1412, %v1416
    %v1435 = vunpack.c.l.b16 %v1396
    %v1436 = vunpack.c.l.b16 %v1397
    %v1437 = vunpack.c.l.b16 %v1398
    %v1438 = vunpack.c.l.b16 %v1399
    %v1439 = vunpack.c.l.b16 %v1400
    %v1440 = vunpack.c.l.b16 %v1401
    %v1441 = vunpack.c.l.b16 %v1402
    %v1442 = vunpack.c.l.b16 %v1403
    %v1443 = vunpack.c.l.b16 %v1404
    %v1444 = vunpack.c.l.b16 %v1405
    %v1445 = vunpack.c.l.b16 %v1406
    %v1446 = vunpack.c.l.b16 %v1407
    %v1447 = vunpack.c.l.b16 %v1408
    %v1448 = vunpack.c.l.b16 %v1409
    %v1449 = vunpack.c.l.b16 %v1410
    %v1450 = vunpack.c.l.b16 %v1411
    %v1451 = vpack.c.b16 %v1436, %v1435
    %v1452 = vpack.c.b16 %v1438, %v1437
    %v1453 = vpack.c.b16 %v1440, %v1439
    %v1454 = vpack.c.b16 %v1442, %v1441
    %v1455 = vpack.c.b16 %v1444, %v1443
    %v1456 = vpack.c.b16 %v1446, %v1445
    %v1457 = vpack.c.b16 %v1448, %v1447
    %v1458 = vpack.c.b16 %v1450, %v1449
    %1467 = vmatprep.subr.bf16.mxu0 0
    %1468 = vmatpush1.bf16.msra.mxu0 %v1451
    %1469 = vmatprep.subr.bf16.mxu0 0
    %1470 = vmatpush1.bf16.msra.mxu0 %v1452
    %1471 = vmatprep.subr.bf16.mxu0 0
    %1472 = vmatpush1.bf16.msra.mxu0 %v1453
    %1473 = vmatprep.subr.bf16.mxu0 0
    %1474 = vmatpush1.bf16.msra.mxu0 %v1454
    %1475 = vmatprep.subr.bf16.mxu0 0
    %1476 = vmatpush1.bf16.msra.mxu0 %v1455
    %1477 = vmatprep.subr.bf16.mxu0 0
    %1478 = vmatpush1.bf16.msra.mxu0 %v1456
    %1479 = vmatprep.subr.bf16.mxu0 0
    %1480 = vmatpush1.bf16.msra.mxu0 %v1457
    %1481 = vmatprep.subr.bf16.mxu0 0
    %1482 = vmatpush1.bf16.msra.mxu0 %v1458
    %1483 = vmatprep.subr.bf16.mxu0 0
    %1484 = vmatpush1.bf16.msra.mxu0 0
    %1485 = vmatprep.subr.bf16.mxu0 0
    %1486 = vmatpush1.bf16.msra.mxu0 0
    %1487 = vmatprep.subr.bf16.mxu0 0
    %1488 = vmatpush1.bf16.msra.mxu0 0
    %1489 = vmatprep.subr.bf16.mxu0 0
    %1490 = vmatpush1.bf16.msra.mxu0 0
    %1491 = vmatprep.subr.bf16.mxu0 0
    %1492 = vmatpush1.bf16.msra.mxu0 0
    %1493 = vmatprep.subr.bf16.mxu0 0
    %1494 = vmatpush1.bf16.msra.mxu0 0
    %1495 = vmatprep.subr.bf16.mxu0 0
    %1496 = vmatpush1.bf16.msra.mxu0 0
    %1497 = vmatprep.subr.bf16.mxu0 0
    %1498 = vmatpush1.bf16.msra.mxu0 0
    %1499 = vmatprep.mubr.bf16.mxu0 0
    %1500 = vmatmul.mubr.bf16.gmra.mrb[0].mxu0 %v1395
    %v1501 = vpop.f32.mrb[0].mxu0
    %v1502 = vadd.f32 %v1417, %v1501
    %v1503 = vpop.f32.mrb[0].mxu0
    %v1504 = vpop.f32.mrb[0].mxu0
    %v1505 = vpop.f32.mrb[0].mxu0
    %1506 = vdwg.mxu0
    %1507 = vmax.xlane.f32.xlu0 %v1502
    %v1508 = vpop.xlane.xlu0 %1507
    %v1509 = vsub.f32 %v1502, %v1508
    %v1510 = vmul.f32 %v1509, 1.442695
    %v1511 = vpow.pop %v1510
    %1512 = vadd.xlane.f32.xlu0 %v1511
    %v1513 = vpop.xlane.xlu0 %1512
    %v1514 = vlog2.pop %v1513
    %v1515 = vmul.f32 %v1514, 0.6931472
    %v1516 = vsub.f32 %v1509, %v1515
    %1517 = vst [vmem:[#allocation10] sm:$0xff] %v1516
    // Predicated region
    $region46: #{tpu_custom_call.1} parent=1 // pred_check
      _
    $region47: #{tpu_custom_call.1} parent=1 // pred_check_branch
      %1519 = sbr.rel (0) target = $region49
    $region48: #{tpu_custom_call.1} parent=1 // pred_region
      %s1521 = ssub.s32 128, 128
      %1522 = vsyncadd [#allocation4], %s1521
      %s1524 = sshll.u32 [#allocation10], 4
      %s1525 = int_to_ptr.vmem [resolvable:$true] %s1524
      %1527 = dma.vmem_to_hbm [thread:$0]  %s1525, 128, %s7, [#allocation4]
    $region49: #{tpu_custom_call.1} parent=1 // pred_fallthru
      _
    // Predicated region
    $region50: #{tpu_custom_call.1} parent=1 // pred_check
      _
    $region51: #{tpu_custom_call.1} parent=1 // pred_check_branch
      %1529 = sbr.rel (0) target = $region53
    $region52: #{tpu_custom_call.1} parent=1 // pred_region
      %1530 = dma.done [#allocation4], 128
    $region53: #{tpu_custom_call.1} parent=1 // pred_fallthru
      _
    %1531 = vsyncpa [#allocation3], 1
    %1532 = vsyncpa [#allocation6], 1
    %1533 = vsyncpa [#allocation9], 1
    %1534 = vsyncpa [#allocation4], 1

</llo_original>
